<compile_context>
chip_gen: v6e
topology: v6e:2x2x1
jax: 0.10.0
libtpu: 0.0.40
codegen_flags: <defaults>
</compile_context>

<pallas_src>
import math
import jax
import jax.numpy as jnp
from jax import lax
from jax.experimental import pallas as pl
from jax.experimental.pallas import tpu as pltpu


def _round_up(x, m):
    return ((x + m - 1) // m) * m


def _net_kernel(emb_ref, lbias_ref, w_ref, cbias_ref, out_ref):
    # Recompute the normalized + biased + ReLU'd query every grid step (cheap VPU/EUP
    # work, fully hidden under the weight/output DMA) so there is no cross-iteration
    # state and both grid axes can be core-parallel.
    emb = emb_ref[...]                                              # [bn, D] f32
    sumsq = jnp.sum(emb * emb, axis=-1, keepdims=True)              # [bn, 1]
    inv = lax.rsqrt(jnp.maximum(sumsq, 1e-12))                      # EUP; eps avoids NaN rows
    q = jnp.maximum(emb * inv + lbias_ref[...], 0.0)                # [bn, D]
    q = q.astype(jnp.bfloat16)

    # logits tile: q [bn, D] x W_tile [tc, D] contracted on D -> [bn, tc]
    # bf16 MXU inputs, f32 accumulation; RHS is consumed transposed by the MXU,
    # no explicit transpose needed.
    logits = lax.dot_general(
        q, w_ref[...],
        dimension_numbers=(((1,), (1,)), ((), ())),
        preferred_element_type=jnp.float32)                         # [bn, tc] f32
    out_ref[...] = (logits + cbias_ref[...]).astype(out_ref.dtype)


def net_forward(emb_sum, layer_bias, weight_bf16, class_bias, *,
                bn=512, tc=4096, out_dtype=jnp.float32):
    """Eval-mode dense forward.

    emb_sum:     [N, D] f32   (already summed over sequence positions)
    layer_bias:  [D]    f32
    weight_bf16: [C, D] bf16  (pre-cast ONCE at parameter-load time, not per call)
    class_bias:  [C]    f32

    Returns [N, C] logits in `out_dtype` (f32 matches the torch module; pass
    jnp.bfloat16 to halve output HBM traffic if the consumer tolerates it).
    """
    N, D = emb_sum.shape
    C = weight_bf16.shape[0]
    assert weight_bf16.dtype == jnp.bfloat16, "pre-cast classifier weight to bf16 at load time"
    assert weight_bf16.shape[1] == D and class_bias.shape == (C,) and layer_bias.shape == (D,)

    # Tile sizes: bn multiple of 16 (bf16 sublane packing), tc multiple of 128
    # (lane-dense output stores).  Clamp to the problem size for small tests so we
    # don't waste VMEM on a mostly-masked block.
    bn = max(16, min(bn, _round_up(N, 16)))
    tc = max(128, min(tc, _round_up(C, 128)))

    # Partial boundary blocks are handled by Pallas with masked stores — no explicit
    # padding of W / biases / emb and no output slice afterwards.
    grid = (pl.cdiv(N, bn), pl.cdiv(C, tc))

    lbias2 = layer_bias.reshape(1, D)
    cbias2 = class_bias.reshape(1, C)

    return pl.pallas_call(
        _net_kernel,
        out_shape=jax.ShapeDtypeStruct((N, C), out_dtype),
        grid_spec=pltpu.PrefetchScalarGridSpec(
            num_scalar_prefetch=0,
            grid=grid,
            in_specs=[
                pl.BlockSpec((bn, D), lambda i, j: (i, 0)),   # emb_sum row tile (f32)
                pl.BlockSpec((1, D), lambda i, j: (0, 0)),    # layer bias (broadcast)
                pl.BlockSpec((tc, D), lambda i, j: (j, 0)),   # classifier weight tile [tc, D] bf16
                pl.BlockSpec((1, tc), lambda i, j: (0, j)),   # class bias tile
            ],
            out_specs=pl.BlockSpec((bn, tc), lambda i, j: (i, j)),
        ),
        compiler_params=pltpu.CompilerParams(
            # Both axes independent (query recomputed per step) -> megacore sharding on
            # the class axis too, so v7x's second TensorCore isn't idle at small batch.
            dimension_semantics=("parallel", "parallel"),
            # bn=512/tc=4096 double-buffered is ~19 MiB; 32 MiB covers v5e's 16 MiB
            # scoped default and stays within v6e/v7x defaults.
            vmem_limit_bytes=32 * 1024 * 1024),
    )(emb_sum, lbias2, weight_bf16, cbias2)


def reference_forward_f32(emb_sum, layer_bias, weight_f32, class_bias):
    # Pure-f32 reference matching the torch eval path.
    norm = jnp.sqrt(jnp.sum(emb_sum * emb_sum, axis=-1, keepdims=True))
    q = jnp.maximum(emb_sum / norm + layer_bias[None, :], 0.0)
    return q @ weight_f32.T + class_bias[None, :]


def reference_forward_bf16(emb_sum, layer_bias, weight_bf16, class_bias):
    # Mirrors the kernel numerics: eps-clamped rsqrt normalization, bf16 matmul inputs,
    # f32 accumulation.
    inv = lax.rsqrt(jnp.maximum(jnp.sum(emb_sum * emb_sum, axis=-1, keepdims=True), 1e-12))
    q = jnp.maximum(emb_sum * inv + layer_bias[None, :], 0.0).astype(jnp.bfloat16)
    prod = lax.dot_general(q, weight_bf16, (((1,), (1,)), ((), ())),
                           preferred_element_type=jnp.float32)
    return prod + class_bias[None, :]


if __name__ == "__main__":
    # ---------------- Test 1: shapes consistent with the module ----------------
    input_size = 64          # vocab size (embedding has input_size+1 rows, last = padding)
    seq = 8                  # tokens per example
    N = 8                    # batch
    D = 128                  # layer_size (embedding dim hardcoded to 128 in nn.Embedding)
    C = 256                  # output_size / num_class

    key = jax.random.PRNGKey(0)
    k_x, k_emb, k_bias, k_w, k_e2, k_w2, k_b2 = jax.random.split(key, 7)

    # Deterministic parameter init mirroring the module's __init__.
    stdv = 1.0 / math.sqrt(input_size)
    emb_table = jax.random.uniform(k_emb, (input_size + 1, D),
                                   minval=-stdv, maxval=stdv, dtype=jnp.float32)
    emb_table = emb_table.at[input_size].set(0.0)   # padding_idx row is zero
    layer_bias = jax.random.uniform(k_bias, (D,), minval=-stdv, maxval=stdv,
                                    dtype=jnp.float32)
    # LSHSampledLayer: weight ~ U(-0.05, 0.05), bias = 0
    weight_f32 = jax.random.uniform(k_w, (C, D), minval=-0.05, maxval=0.05,
                                    dtype=jnp.float32)
    class_bias = jnp.zeros((C,), dtype=jnp.float32)

    # Hoisted "parameter load" cast: done once, outside the per-call path.
    weight_bf16 = weight_f32.astype(jnp.bfloat16)

    # Integer token ids (some equal to padding_idx = input_size).
    x = jax.random.randint(k_x, (N, seq), 0, input_size + 1, dtype=jnp.int32)

    # Glue: embedding gather + sum over sequence dim (data-dependent indexing).
    emb_sum = jnp.sum(jnp.take(emb_table, x, axis=0), axis=1)     # [N, D]

    logits = net_forward(emb_sum, layer_bias, weight_bf16, class_bias)
    logits = jax.block_until_ready(logits)
    assert logits.shape == (N, C)

    ref_bf16 = reference_forward_bf16(emb_sum, layer_bias, weight_bf16, class_bias)
    ref_f32 = reference_forward_f32(emb_sum, layer_bias, weight_f32, class_bias)
    assert jnp.allclose(logits, ref_bf16, atol=1e-3, rtol=1e-3), "mismatch vs bf16-mirrored reference"
    assert jnp.allclose(logits, ref_f32, atol=2e-2, rtol=2e-2), "mismatch vs f32 reference"

    # ------- Test 2: non-divisible N/C to exercise the masked boundary blocks -------
    N2, C2 = 10, 300
    emb_sum2 = jax.random.normal(k_e2, (N2, D), dtype=jnp.float32)
    weight2_f32 = jax.random.uniform(k_w2, (C2, D), minval=-0.05, maxval=0.05,
                                     dtype=jnp.float32)
    class_bias2 = jax.random.uniform(k_b2, (C2,), minval=-0.01, maxval=0.01,
                                     dtype=jnp.float32)
    weight2_bf16 = weight2_f32.astype(jnp.bfloat16)

    logits2 = net_forward(emb_sum2, layer_bias, weight2_bf16, class_bias2)
    logits2 = jax.block_until_ready(logits2)
    assert logits2.shape == (N2, C2)
    ref2_bf16 = reference_forward_bf16(emb_sum2, layer_bias, weight2_bf16, class_bias2)
    ref2_f32 = reference_forward_f32(emb_sum2, layer_bias, weight2_f32, class_bias2)
    assert jnp.allclose(logits2, ref2_bf16, atol=1e-3, rtol=1e-3), "partial-block mismatch vs bf16 reference"
    assert jnp.allclose(logits2, ref2_f32, atol=2e-2, rtol=2e-2), "partial-block mismatch vs f32 reference"

    print("KERNEL_OK")
</pallas_src>

<mosaic_0001>
module attributes {stable_mosaic.version = 11 : i64} {
  func.func @_net_kernel(%arg0: i32, %arg1: i32, %arg2: memref<16x128xf32, #tpu.memory_space<vmem>>, %arg3: memref<1x128xf32, #tpu.memory_space<vmem>>, %arg4: memref<256x128xbf16, #tpu.memory_space<vmem>>, %arg5: memref<1x256xf32, #tpu.memory_space<vmem>>, %arg6: memref<16x256xf32, #tpu.memory_space<vmem>>) attributes {dimension_semantics = [#tpu.dimension_semantics<parallel>, #tpu.dimension_semantics<parallel>], iteration_bounds = array<i64: 1, 1>, scalar_prefetch = 0 : i64, scratch_operands = 0 : i64, tpu.core_type = #tpu.core_type<tc>, window_params = [{transform_indices = @transform_0, window_bounds = array<i64: 16, 128>}, {pipeline_mode = #tpu.pipeline_mode<synchronous>, transform_indices = @transform_1, window_bounds = array<i64: 1, 128>}, {transform_indices = @transform_2, window_bounds = array<i64: 256, 128>}, {transform_indices = @transform_3, window_bounds = array<i64: 1, 256>}, {transform_indices = @transform_4, window_bounds = array<i64: 16, 256>}]} {
    %c0 = arith.constant 0 : index
    %c0_0 = arith.constant 0 : index
    %0 = vector.load %arg2[%c0, %c0_0] : memref<16x128xf32, #tpu.memory_space<vmem>>, vector<16x128xf32>
    %1 = arith.mulf %0, %0 : vector<16x128xf32>
    %cst = arith.constant dense<0.000000e+00> : vector<16xf32>
    %2 = vector.multi_reduction <add>, %1, %cst [1] : vector<16x128xf32> to vector<16xf32>
    %3 = vector.shape_cast %2 : vector<16xf32> to vector<16x1xf32>
    %cst_1 = arith.constant 9.99999996E-13 : f32
    %4 = vector.broadcast %cst_1 : f32 to vector<16x1xf32>
    %5 = arith.maximumf %3, %4 : vector<16x1xf32>
    %6 = math.rsqrt %5 : vector<16x1xf32>
    %7 = vector.broadcast %6 : vector<16x1xf32> to vector<16x128xf32>
    %8 = arith.mulf %0, %7 : vector<16x128xf32>
    %c0_2 = arith.constant 0 : index
    %c0_3 = arith.constant 0 : index
    %9 = vector.load %arg3[%c0_2, %c0_3] : memref<1x128xf32, #tpu.memory_space<vmem>>, vector<1x128xf32>
    %10 = vector.broadcast %9 : vector<1x128xf32> to vector<16x128xf32>
    %11 = arith.addf %8, %10 : vector<16x128xf32>
    %cst_4 = arith.constant 0.000000e+00 : f32
    %12 = vector.broadcast %cst_4 : f32 to vector<16x128xf32>
    %13 = arith.maximumf %11, %12 : vector<16x128xf32>
    %14 = arith.truncf %13 : vector<16x128xf32> to vector<16x128xbf16>
    %c0_5 = arith.constant 0 : index
    %c0_6 = arith.constant 0 : index
    %15 = vector.load %arg4[%c0_5, %c0_6] : memref<256x128xbf16, #tpu.memory_space<vmem>>, vector<256x128xbf16>
    %cst_7 = arith.constant dense<0.000000e+00> : vector<16x256xf32>
    %16 = tpu.matmul %14, %15, %cst_7 {dimension_numbers = #tpu.dot_dimension_numbers<[1], [1], [0], [0], [0, 0, 1, 0], [], []>} : vector<16x128xbf16>, vector<256x128xbf16>, vector<16x256xf32> -> vector<16x256xf32>
    %c0_8 = arith.constant 0 : index
    %c0_9 = arith.constant 0 : index
    %17 = vector.load %arg5[%c0_8, %c0_9] : memref<1x256xf32, #tpu.memory_space<vmem>>, vector<1x256xf32>
    %18 = vector.broadcast %17 : vector<1x256xf32> to vector<16x256xf32>
    %19 = arith.addf %16, %18 : vector<16x256xf32>
    %c0_10 = arith.constant 0 : index
    %c0_11 = arith.constant 0 : index
    %20 = vector.load %arg6[%c0_10, %c0_11] : memref<16x256xf32, #tpu.memory_space<vmem>>, vector<16x256xf32>
    tpu.vector_store %arg6[%c0_10, %c0_11], %19 {strides = array<i32>} : memref<16x256xf32, #tpu.memory_space<vmem>>, vector<16x256xf32>,
    return
  }
  func.func @transform_0(%arg0: i32, %arg1: i32) -> (i32, i32) {
    %c0_i32 = arith.constant 0 : i32
    %c0_i32_0 = arith.constant 0 : i32
    return %arg0, %c0_i32 : i32, i32
  }
  func.func @transform_1(%arg0: i32, %arg1: i32) -> (i32, i32) {
    %c0_i32 = arith.constant 0 : i32
    %c0_i32_0 = arith.constant 0 : i32
    %c0_i32_1 = arith.constant 0 : i32
    return %c0_i32, %c0_i32_0 : i32, i32
  }
  func.func @transform_2(%arg0: i32, %arg1: i32) -> (i32, i32) {
    %c0_i32 = arith.constant 0 : i32
    %c0_i32_0 = arith.constant 0 : i32
    return %arg1, %c0_i32 : i32, i32
  }
  func.func @transform_3(%arg0: i32, %arg1: i32) -> (i32, i32) {
    %c0_i32 = arith.constant 0 : i32
    %c0_i32_0 = arith.constant 0 : i32
    return %c0_i32, %arg1 : i32, i32
  }
  func.func @transform_4(%arg0: i32, %arg1: i32) -> (i32, i32) {
    %c0_i32 = arith.constant 0 : i32
    return %arg0, %arg1 : i32, i32
  }
}

</mosaic_0001>

<llo_original>
// kernel: tpu_custom_call.1
$region0: #{tpu_custom_call.1}
  #allocation0 [shape = 'u32[]', space=smem, size = 0x4, offset = 0x4, fixed_abs, tag = 'smem constant byte address 0x4 - core index']
  #allocation1 [shape = 'u32[144,128]{1,0:T(1,128)}', space=vmem, size = 0x12000, scoped, tag = 'internal scratch']
  %s0 = inlined_call_operand.hbm [shape: f32[8,128], index: 0, kind: input, shape index: {}]
  %s1 = inlined_call_operand.vmem [shape: f32[1,128], index: 1, kind: input, shape index: {}]
  %s2 = inlined_call_operand.hbm [shape: bf16[256,128], index: 2, kind: input, shape index: {}]
  %s3 = inlined_call_operand.vmem [shape: f32[1,256], index: 3, kind: input, shape index: {}]
  %s4 = inlined_call_operand.hbm [shape: f32[8,256], index: 4, kind: output, shape index: {}]
  %s5 = sld [smem:[#allocation0]]
  $region34: #{tpu_custom_call.1} parent=0
    _
  %s7 = ssub.s32 1, %s5
  %s8 = scalar_select 0, %s7, %s5
  $region1: #{tpu_custom_call.1} parent=0
    #allocation2 [shape = 'u8[8192]{0}', space=vmem, size = 0x2000, scoped, tag = 'input window, operand 0, single buffered']
    #allocation3 [shape = 's32[1]{0}', space=sflag, size = 0x4, scoped, tag = 'scoped memory for tpu_custom_call.1']
    #allocation4 [shape = 's32[1]{0}', space=sflag, size = 0x4, scoped, tag = 'scoped memory for tpu_custom_call.1']
    #allocation5 [shape = 'u8[65536]{0}', space=vmem, size = 0x10000, scoped, tag = 'input window, operand 2, single buffered']
    #allocation6 [shape = 's32[1]{0}', space=sflag, size = 0x4, scoped, tag = 'scoped memory for tpu_custom_call.1']
    #allocation7 [shape = 'u8[16384]{0}', space=vmem, size = 0x4000, scoped, tag = 'output window, operand 0, single buffered']
    %9 = vsyncpa [#allocation3], 0
    %10 = vsyncpa [#allocation6], 0
    %11 = vsyncpa [#allocation4], 0
    // Predicated region
    $region2: #{tpu_custom_call.1} parent=1 // pred_check
      _
    $region3: #{tpu_custom_call.1} parent=1 // pred_check_branch
      %13 = sbr.rel (0) target = $region5
    $region4: #{tpu_custom_call.1} parent=1 // pred_region
      %s15 = ssub.s32 256, 128
      %16 = vsyncadd [#allocation3], %s15
      %s17 = sshll.u32 [#allocation2], 4
      %s18 = int_to_ptr.vmem [resolvable:$true] %s17
      %23 = dma.hbm_to_vmem [thread:$0]  %s0, 128, %s18, [#allocation3], 128, 128, 8
    $region5: #{tpu_custom_call.1} parent=1 // pred_fallthru
      _
    // Predicated region
    $region6: #{tpu_custom_call.1} parent=1 // pred_check
      _
    $region7: #{tpu_custom_call.1} parent=1 // pred_check_branch
      %25 = sbr.rel (0) target = $region9
    $region8: #{tpu_custom_call.1} parent=1 // pred_region
      _
    $region9: #{tpu_custom_call.1} parent=1 // pred_fallthru
      _
    // Predicated region
    $region10: #{tpu_custom_call.1} parent=1 // pred_check
      _
    $region11: #{tpu_custom_call.1} parent=1 // pred_check_branch
      %27 = sbr.rel (0) target = $region13
    $region12: #{tpu_custom_call.1} parent=1 // pred_region
      %s29 = ssub.s32 2048, 2048
      %30 = vsyncadd [#allocation6], %s29
      %s31 = sshll.u32 [#allocation5], 4
      %s32 = int_to_ptr.vmem [resolvable:$true] %s31
      %37 = dma.hbm_to_vmem [thread:$0]  %s2, 2048, %s32, [#allocation6], 64, 64, 4
    $region13: #{tpu_custom_call.1} parent=1 // pred_fallthru
      _
    // Predicated region
    $region14: #{tpu_custom_call.1} parent=1 // pred_check
      _
    $region15: #{tpu_custom_call.1} parent=1 // pred_check_branch
      %39 = sbr.rel (0) target = $region17
    $region16: #{tpu_custom_call.1} parent=1 // pred_region
      _
    $region17: #{tpu_custom_call.1} parent=1 // pred_fallthru
      _
    // Predicated region
    $region18: #{tpu_custom_call.1} parent=1 // pred_check
      _
    $region19: #{tpu_custom_call.1} parent=1 // pred_check_branch
      %41 = sbr.rel (0) target = $region21
    $region20: #{tpu_custom_call.1} parent=1 // pred_region
      %42 = dma.done [#allocation3], 256
    $region21: #{tpu_custom_call.1} parent=1 // pred_fallthru
      _
    // Predicated region
    $region22: #{tpu_custom_call.1} parent=1 // pred_check
      _
    $region23: #{tpu_custom_call.1} parent=1 // pred_check_branch
      %44 = sbr.rel (0) target = $region25
    $region24: #{tpu_custom_call.1} parent=1 // pred_region
      %45 = dma.done [#allocation6], 2048
    $region25: #{tpu_custom_call.1} parent=1 // pred_fallthru
      _
    %v47 = vld [vmem:[#allocation2] sm:$0xff]
    %v48 = vld [vmem:[#allocation2 + $0x8] sm:$0xff]
    %v49 = vmul.f32 %v47, %v47
    %v50 = vmul.f32 %v48, %v48
    %51 = vadd.xlane.f32.xlu0 %v49
    %v52 = vpop.xlane.xlu0 %51
    %53 = vadd.xlane.f32.xlu0 %v50
    %v54 = vpop.xlane.xlu0 %53
    %v55 = vmax.f32 %v52, 1e-12
    %v56 = vmax.f32 %v54, 1e-12
    %v57 = vrsqrt.pop %v55
    %v58 = vrsqrt.pop %v56
    %v59 = vmul.f32 %v47, %v57
    %v60 = vmul.f32 %v48, %v58
    %v61 = vld [vmem:[%s1] sm:$0x1]
    %v63 = vlaneseq
    %v64 = vshrl.u32 %v63, 7
    %v65 = vsub.s32 0, %v64
    %v66 = vrot.slane %v61, %v65
    %v68 = vadd.f32 %v59, %v66
    %v69 = vadd.f32 %v60, %v66
    %v70 = vmax.f32 %v68, 0.0
    %v71 = vmax.f32 %v69, 0.0
    %v72 = vpack.c.bf16 %v71, %v70
    %v73 = vld [vmem:[#allocation5] sm:$0xf]
    %v74 = vld [vmem:[#allocation5 + $0x4] sm:$0xf]
    %v75 = vld [vmem:[#allocation5 + $0x8] sm:$0xf]
    %v76 = vld [vmem:[#allocation5 + $0xc] sm:$0xf]
    %v77 = vld [vmem:[#allocation5 + $0x10] sm:$0xf]
    %v78 = vld [vmem:[#allocation5 + $0x14] sm:$0xf]
    %v79 = vld [vmem:[#allocation5 + $0x18] sm:$0xf]
    %v80 = vld [vmem:[#allocation5 + $0x1c] sm:$0xf]
    %v81 = vld [vmem:[#allocation5 + $0x20] sm:$0xf]
    %v82 = vld [vmem:[#allocation5 + $0x24] sm:$0xf]
    %v83 = vld [vmem:[#allocation5 + $0x28] sm:$0xf]
    %v84 = vld [vmem:[#allocation5 + $0x2c] sm:$0xf]
    %v85 = vld [vmem:[#allocation5 + $0x30] sm:$0xf]
    %v86 = vld [vmem:[#allocation5 + $0x34] sm:$0xf]
    %v87 = vld [vmem:[#allocation5 + $0x38] sm:$0xf]
    %v88 = vld [vmem:[#allocation5 + $0x3c] sm:$0xf]
    %v89 = vld [vmem:[#allocation5 + $0x40] sm:$0xf]
    %v90 = vld [vmem:[#allocation5 + $0x44] sm:$0xf]
    %v91 = vld [vmem:[#allocation5 + $0x48] sm:$0xf]
    %v92 = vld [vmem:[#allocation5 + $0x4c] sm:$0xf]
    %v93 = vld [vmem:[#allocation5 + $0x50] sm:$0xf]
    %v94 = vld [vmem:[#allocation5 + $0x54] sm:$0xf]
    %v95 = vld [vmem:[#allocation5 + $0x58] sm:$0xf]
    %v96 = vld [vmem:[#allocation5 + $0x5c] sm:$0xf]
    %v97 = vld [vmem:[#allocation5 + $0x60] sm:$0xf]
    %v98 = vld [vmem:[#allocation5 + $0x64] sm:$0xf]
    %v99 = vld [vmem:[#allocation5 + $0x68] sm:$0xf]
    %v100 = vld [vmem:[#allocation5 + $0x6c] sm:$0xf]
    %v101 = vld [vmem:[#allocation5 + $0x70] sm:$0xf]
    %v102 = vld [vmem:[#allocation5 + $0x74] sm:$0xf]
    %v103 = vld [vmem:[#allocation5 + $0x78] sm:$0xf]
    %v104 = vld [vmem:[#allocation5 + $0x7c] sm:$0xf]
    %v105 = vld [vmem:[%s3] sm:$0x3]
    %v107 = vlaneseq
    %v108 = vshrl.u32 %v107, 7
    %v109 = vsub.s32 0, %v108
    %v110 = vrot.slane %v105, %v109
    %v111 = vlaneseq
    %v112 = vshrl.u32 %v111, 7
    %v113 = vsub.s32 1, %v112
    %v114 = vrot.slane %v105, %v113
    %v149 = vunpack.c.l.b16 %v73
    %v150 = vunpack.c.l.b16 %v74
    %v151 = vunpack.c.l.b16 %v75
    %v152 = vunpack.c.l.b16 %v76
    %v153 = vunpack.c.l.b16 %v77
    %v154 = vunpack.c.l.b16 %v78
    %v155 = vunpack.c.l.b16 %v79
    %v156 = vunpack.c.l.b16 %v80
    %v157 = vunpack.c.l.b16 %v81
    %v158 = vunpack.c.l.b16 %v82
    %v159 = vunpack.c.l.b16 %v83
    %v160 = vunpack.c.l.b16 %v84
    %v161 = vunpack.c.l.b16 %v85
    %v162 = vunpack.c.l.b16 %v86
    %v163 = vunpack.c.l.b16 %v87
    %v164 = vunpack.c.l.b16 %v88
    %v165 = vunpack.c.l.b16 %v89
    %v166 = vunpack.c.l.b16 %v90
    %v167 = vunpack.c.l.b16 %v91
    %v168 = vunpack.c.l.b16 %v92
    %v169 = vunpack.c.l.b16 %v93
    %v170 = vunpack.c.l.b16 %v94
    %v171 = vunpack.c.l.b16 %v95
    %v172 = vunpack.c.l.b16 %v96
    %v173 = vunpack.c.l.b16 %v97
    %v174 = vunpack.c.l.b16 %v98
    %v175 = vunpack.c.l.b16 %v99
    %v176 = vunpack.c.l.b16 %v100
    %v177 = vunpack.c.l.b16 %v101
    %v178 = vunpack.c.l.b16 %v102
    %v179 = vunpack.c.l.b16 %v103
    %v180 = vunpack.c.l.b16 %v104
    %v181 = vpack.c.b16 %v150, %v149
    %v182 = vpack.c.b16 %v152, %v151
    %v183 = vpack.c.b16 %v154, %v153
    %v184 = vpack.c.b16 %v156, %v155
    %v185 = vpack.c.b16 %v158, %v157
    %v186 = vpack.c.b16 %v160, %v159
    %v187 = vpack.c.b16 %v162, %v161
    %v188 = vpack.c.b16 %v164, %v163
    %v189 = vpack.c.b16 %v166, %v165
    %v190 = vpack.c.b16 %v168, %v167
    %v191 = vpack.c.b16 %v170, %v169
    %v192 = vpack.c.b16 %v172, %v171
    %v193 = vpack.c.b16 %v174, %v173
    %v194 = vpack.c.b16 %v176, %v175
    %v195 = vpack.c.b16 %v178, %v177
    %v196 = vpack.c.b16 %v180, %v179
    %213 = vmatprep.subr.bf16.mxu0 0
    %214 = vmatpush1.bf16.xpose.msra.mxu0 %v188
    %215 = vmatprep.subr.bf16.mxu0 0
    %216 = vmatpush1.bf16.xpose.msra.mxu0 %v187
    %217 = vmatprep.subr.bf16.mxu0 0
    %218 = vmatpush1.bf16.xpose.msra.mxu0 %v186
    %219 = vmatprep.subr.bf16.mxu0 0
    %220 = vmatpush1.bf16.xpose.msra.mxu0 %v185
    %221 = vmatprep.subr.bf16.mxu0 0
    %222 = vmatpush1.bf16.xpose.msra.mxu0 %v184
    %223 = vmatprep.subr.bf16.mxu0 0
    %224 = vmatpush1.bf16.xpose.msra.mxu0 %v183
    %225 = vmatprep.subr.bf16.mxu0 0
    %226 = vmatpush1.bf16.xpose.msra.mxu0 %v182
    %227 = vmatprep.subr.bf16.mxu0 0
    %228 = vmatpush1.bf16.xpose.msra.mxu0 %v181
    %229 = vmatprep.subr.bf16.mxu0 0
    %230 = vmatpush2.bf16.xpose.msra.mxu0 %v196
    %231 = vmatprep.subr.bf16.mxu0 0
    %232 = vmatpush2.bf16.xpose.msra.mxu0 %v195
    %233 = vmatprep.subr.bf16.mxu0 0
    %234 = vmatpush2.bf16.xpose.msra.mxu0 %v194
    %235 = vmatprep.subr.bf16.mxu0 0
    %236 = vmatpush2.bf16.xpose.msra.mxu0 %v193
    %237 = vmatprep.subr.bf16.mxu0 0
    %238 = vmatpush2.bf16.xpose.msra.mxu0 %v192
    %239 = vmatprep.subr.bf16.mxu0 0
    %240 = vmatpush2.bf16.xpose.msra.mxu0 %v191
    %241 = vmatprep.subr.bf16.mxu0 0
    %242 = vmatpush2.bf16.xpose.msra.mxu0 %v190
    %243 = vmatprep.subr.bf16.mxu0 0
    %244 = vmatpush2.bf16.xpose.msra.mxu0 %v189
    %245 = vmatprep.mubr.bf16.mxu0 0
    %246 = vmatmul.mubr.bf16.gmra.mxu0 %v72
    %v247 = vpop.f32.mrf.mxu0
    %v248 = vadd.f32 %v110, %v247
    %v249 = vpop.f32.mrf.mxu0
    %v250 = vadd.f32 %v114, %v249
    %v251 = vpop.f32.mrf.mxu0
    %v252 = vadd.f32 %v110, %v251
    %v253 = vpop.f32.mrf.mxu0
    %v254 = vadd.f32 %v114, %v253
    %255 = vdwg.mxu0
    %256 = vst [vmem:[#allocation7] sm:$0xff] %v248
    %257 = vst [vmem:[#allocation7 + $0x8] sm:$0xff] %v250
    %258 = vst [vmem:[#allocation7 + $0x10] sm:$0xff] %v252
    %259 = vst [vmem:[#allocation7 + $0x18] sm:$0xff] %v254
    // Predicated region
    $region26: #{tpu_custom_call.1} parent=1 // pred_check
      _
    $region27: #{tpu_custom_call.1} parent=1 // pred_check_branch
      %261 = sbr.rel (0) target = $region29
    $region28: #{tpu_custom_call.1} parent=1 // pred_region
      %s263 = ssub.s32 512, 256
      %264 = vsyncadd [#allocation4], %s263
      %s265 = sshll.u32 [#allocation7], 4
      %s266 = int_to_ptr.vmem [resolvable:$true] %s265
      %271 = dma.vmem_to_hbm [thread:$0]  %s266, 256, %s4, [#allocation4], 256, 256, 16
    $region29: #{tpu_custom_call.1} parent=1 // pred_fallthru
      _
    // Predicated region
    $region30: #{tpu_custom_call.1} parent=1 // pred_check
      _
    $region31: #{tpu_custom_call.1} parent=1 // pred_check_branch
      %273 = sbr.rel (0) target = $region33
    $region32: #{tpu_custom_call.1} parent=1 // pred_region
      %274 = dma.done [#allocation4], 512
    $region33: #{tpu_custom_call.1} parent=1 // pred_fallthru
      _
    %275 = vsyncpa [#allocation3], 1
    %276 = vsyncpa [#allocation6], 1
    %277 = vsyncpa [#allocation4], 1

</llo_original>
